<compile_context>
chip_gen: v6e
topology: v6e:2x2x1
jax: 0.10.0
libtpu: 0.0.40
codegen_flags: <defaults>
</compile_context>

<pallas_src>
import functools

import jax
import jax.numpy as jnp
from jax import lax
from jax.experimental import pallas as pl
from jax.experimental.pallas import tpu as pltpu

R1 = 1e-4
R2 = 1e-4
EPS = 1e-12

_LANE = 128
_SUBLANE = 8


def _round_up(x, n):
    return (x + n - 1) // n * n


def _gram_kernel(h1_ref, h2_ref, g11_ref, g22_ref, g12_ref, s1_ref, s2_ref, *,
                 tile_m, steps_per_split, m_valid, needs_mask):
    """Accumulate raw Gram matrices and column sums over the sample axis.

    h1_ref: (tile_m, o1), h2_ref: (tile_m, o2)   -- native input dtype.
    g11/g22/g12: f32 (o1,o1)/(o2,o2)/(o1,o2)      -- VMEM-resident accumulators.
    s1/s2: f32 (1,o1)/(1,o2)                      -- column sums.
    """
    i = pl.program_id(1)

    @pl.when(i == 0)
    def _():
        g11_ref[...] = jnp.zeros_like(g11_ref)
        g22_ref[...] = jnp.zeros_like(g22_ref)
        g12_ref[...] = jnp.zeros_like(g12_ref)
        s1_ref[...] = jnp.zeros_like(s1_ref)
        s2_ref[...] = jnp.zeros_like(s2_ref)

    x1 = h1_ref[...]
    x2 = h2_ref[...]

    if needs_mask:
        # Zero rows past the true sample count (partial / duplicated tiles).
        start = (pl.program_id(0) * steps_per_split + i) * tile_m
        rows = start + lax.broadcasted_iota(jnp.int32, (tile_m, 1), 0)
        valid = rows < m_valid
        x1 = jnp.where(valid, x1, jnp.zeros_like(x1))
        x2 = jnp.where(valid, x2, jnp.zeros_like(x2))

    # Contract over the sample axis: (tile_m, oA)^T @ (tile_m, oB) -> (oA, oB).
    # Native-dtype (e.g. bf16) operands go straight to the MXU; accumulate f32.
    dn = (((0,), (0,)), ((), ()))
    g11_ref[...] += lax.dot_general(x1, x1, dn, preferred_element_type=jnp.float32)
    g22_ref[...] += lax.dot_general(x2, x2, dn, preferred_element_type=jnp.float32)
    g12_ref[...] += lax.dot_general(x1, x2, dn, preferred_element_type=jnp.float32)

    # Mean/centering arithmetic stays in f32 on all chip generations.
    s1_ref[...] += jnp.sum(x1.astype(jnp.float32), axis=0, keepdims=True)
    s2_ref[...] += jnp.sum(x2.astype(jnp.float32), axis=0, keepdims=True)


def _tt_kernel(v1_ref, d1_ref, v2_ref, d2_ref, s12_ref, tt_ref):
    """Compute T^T @ T where T = S11^{-1/2} S12 S22^{-1/2}.

    v*_ref: (o,o) eigenvectors, d*_ref: (1,o) eigenvalues, s12_ref: (o1,o2).
    Non-positive eigenvalues are masked out (== the torch posInd selection).
    """
    v1 = v1_ref[...]
    v2 = v2_ref[...]
    d1 = d1_ref[...]  # (1, o1)
    d2 = d2_ref[...]  # (1, o2)
    s12 = s12_ref[...]

    dinv1 = jnp.where(d1 > EPS, lax.rsqrt(jnp.maximum(d1, EPS)), 0.0)
    dinv2 = jnp.where(d2 > EPS, lax.rsqrt(jnp.maximum(d2, EPS)), 0.0)

    # A @ B^T contraction (avoids explicit transpose).
    dn_bt = (((1,), (1,)), ((), ()))
    # SigmaHat^{-1/2} = V diag(d^{-1/2}) V^T = (V * d^{-1/2}[None,:]) @ V^T
    k1 = lax.dot_general(v1 * dinv1, v1, dn_bt, preferred_element_type=jnp.float32)
    k2 = lax.dot_general(v2 * dinv2, v2, dn_bt, preferred_element_type=jnp.float32)

    t = jnp.dot(jnp.dot(k1, s12, preferred_element_type=jnp.float32), k2,
                preferred_element_type=jnp.float32)

    # T^T @ T  (contract over rows)
    dn_tt = (((0,), (0,)), ((), ()))
    tt_ref[...] = lax.dot_general(t, t, dn_tt, preferred_element_type=jnp.float32)


def _pick_tile_m(m_pad, o1, o2, itemsize, budget_bytes=24 << 20):
    """Largest sample-tile whose double-buffered, lane-padded footprint fits."""
    per_row = (_round_up(o1, _LANE) + _round_up(o2, _LANE)) * itemsize
    tm = _round_up(min(512, m_pad), _SUBLANE)
    while tm > _SUBLANE and 2 * tm * per_row > budget_bytes:  # 2 = double buffer
        tm = _round_up(tm // 2, _SUBLANE)
    return tm


def _cov_matrices(h1, h2, n_split=2):
    """S11, S22, S12 via a tiled one-pass Gram accumulation Pallas kernel."""
    m, o1 = h1.shape
    _, o2 = h2.shape
    itemsize = max(h1.dtype.itemsize, h2.dtype.itemsize)

    # Sample axis must be a sublane multiple; zero-pad rows only when needed.
    m_pad = _round_up(m, _SUBLANE)
    if m_pad != m:
        h1 = jnp.pad(h1, ((0, m_pad - m), (0, 0)))
        h2 = jnp.pad(h2, ((0, m_pad - m), (0, 0)))

    tm = _pick_tile_m(m_pad, o1, o2, itemsize)
    n_blk = pl.cdiv(m_pad, tm)
    nsplit = n_split if n_blk >= n_split else 1
    spb = pl.cdiv(n_blk, nsplit)  # sample tiles per split
    needs_mask = (nsplit * spb * tm) != m_pad

    if nsplit * spb == n_blk:
        def in_map(c, i):
            return (c * spb + i, 0)
    else:
        def in_map(c, i):  # clamp so the DMA never walks past the last tile
            return (jnp.minimum(c * spb + i, n_blk - 1), 0)

    def out_map(c, i):
        return (c, 0, 0)

    kernel = functools.partial(
        _gram_kernel, tile_m=tm, steps_per_split=spb,
        m_valid=m_pad, needs_mask=needs_mask)

    # VMEM budget: double-buffered native-dtype inputs + small f32 accumulators.
    in_bytes = 2 * tm * (_round_up(o1, _LANE) + _round_up(o2, _LANE)) * itemsize
    out_bytes = 2 * 4 * (
        _round_up(o1, _SUBLANE) * _round_up(o1, _LANE)
        + _round_up(o2, _SUBLANE) * _round_up(o2, _LANE)
        + _round_up(o1, _SUBLANE) * _round_up(o2, _LANE)
        + _SUBLANE * (_round_up(o1, _LANE) + _round_up(o2, _LANE)))
    vmem_limit = int(min(48 << 20, max(32 << 20, 2 * (in_bytes + out_bytes))))

    flops = 2 * m_pad * (o1 * o1 + o2 * o2 + o1 * o2) + m_pad * (o1 + o2)
    bytes_accessed = m_pad * (o1 + o2) * itemsize + nsplit * 4 * (
        o1 * o1 + o2 * o2 + o1 * o2 + o1 + o2)

    g11, g22, g12, s1, s2 = pl.pallas_call(
        kernel,
        grid=(nsplit, spb),
        in_specs=[
            pl.BlockSpec((tm, o1), in_map),
            pl.BlockSpec((tm, o2), in_map),
        ],
        out_specs=(
            pl.BlockSpec((None, o1, o1), out_map),
            pl.BlockSpec((None, o2, o2), out_map),
            pl.BlockSpec((None, o1, o2), out_map),
            pl.BlockSpec((None, 1, o1), out_map),
            pl.BlockSpec((None, 1, o2), out_map),
        ),
        out_shape=(
            jax.ShapeDtypeStruct((nsplit, o1, o1), jnp.float32),
            jax.ShapeDtypeStruct((nsplit, o2, o2), jnp.float32),
            jax.ShapeDtypeStruct((nsplit, o1, o2), jnp.float32),
            jax.ShapeDtypeStruct((nsplit, 1, o1), jnp.float32),
            jax.ShapeDtypeStruct((nsplit, 1, o2), jnp.float32),
        ),
        compiler_params=pltpu.CompilerParams(
            dimension_semantics=("parallel", "arbitrary"),
            vmem_limit_bytes=vmem_limit),
        cost_estimate=pl.CostEstimate(
            flops=int(flops), transcendentals=0,
            bytes_accessed=int(bytes_accessed)),
    )(h1, h2)

    # Combine per-split partials and finalize the tiny (o x o) covariance math.
    # Note: Gram identity with f32 accumulators; centering correction in f32.
    g11 = jnp.sum(g11, axis=0)
    g22 = jnp.sum(g22, axis=0)
    g12 = jnp.sum(g12, axis=0)
    mu1 = jnp.sum(s1, axis=0) / m  # (1, o1)
    mu2 = jnp.sum(s2, axis=0) / m  # (1, o2)

    scale = 1.0 / (m - 1)
    s11 = scale * (g11 - m * (mu1.T @ mu1)) + R1 * jnp.eye(o1, dtype=jnp.float32)
    s22 = scale * (g22 - m * (mu2.T @ mu2)) + R2 * jnp.eye(o2, dtype=jnp.float32)
    s12 = scale * (g12 - m * (mu1.T @ mu2))
    return s11, s22, s12


def cca_loss(h1, h2, outdim, use_all_singular_values=False):
    m, o1 = h1.shape
    m2, o2 = h2.shape
    assert m == m2

    s11, s22, s12 = _cov_matrices(h1, h2)

    # TODO(synk): torch.symeig has no Pallas equivalent; eigendecomposition runs in XLA.
    d1, v1 = jnp.linalg.eigh(s11)
    d2, v2 = jnp.linalg.eigh(s22)

    vmem_spec = pl.BlockSpec(memory_space=pltpu.MemorySpace.VMEM)
    tt = pl.pallas_call(
        _tt_kernel,
        out_shape=jax.ShapeDtypeStruct((o2, o2), jnp.float32),
        in_specs=[vmem_spec] * 5,
        out_specs=vmem_spec,
    )(v1, d1.reshape(1, o1), v2, d2.reshape(1, o2), s12)

    if use_all_singular_values:
        corr = jnp.sqrt(jnp.trace(tt))
    else:
        tt_reg = tt + R1 * jnp.eye(o2, dtype=jnp.float32)
        # TODO(synk): eigenvalue solve of trace_TT also stays in XLA.
        u = jnp.linalg.eigh(tt_reg)[0]
        u = jnp.where(u > EPS, u, EPS)
        u_top = lax.top_k(u, outdim)[0]
        corr = jnp.sum(jnp.sqrt(u_top))
    return -corr


if __name__ == "__main__":
    key = jax.random.PRNGKey(0)
    k1, k2 = jax.random.split(key)

    m, o = 32, 8      # m samples, o features per view
    outdim = 4        # CCALoss(outdim=4)

    H1 = jax.random.normal(k1, (m, o), dtype=jnp.float32)
    H2 = jax.random.normal(k2, (m, o), dtype=jnp.float32)

    loss = cca_loss(H1, H2, outdim, use_all_singular_values=False)
    loss = jax.block_until_ready(loss)
    assert bool(jnp.isfinite(loss)), "CCA loss is not finite"
    print("KERNEL_OK")
</pallas_src>

<mosaic_0001>
module attributes {stable_mosaic.version = 11 : i64} {
  func.func @_gram_kernel(%arg0: i32, %arg1: i32, %arg2: memref<32x8xf32, #tpu.memory_space<vmem>>, %arg3: memref<32x8xf32, #tpu.memory_space<vmem>>, %arg4: memref<1x8x8xf32, #tpu.memory_space<vmem>>, %arg5: memref<1x8x8xf32, #tpu.memory_space<vmem>>, %arg6: memref<1x8x8xf32, #tpu.memory_space<vmem>>, %arg7: memref<1x1x8xf32, #tpu.memory_space<vmem>>, %arg8: memref<1x1x8xf32, #tpu.memory_space<vmem>>) attributes {dimension_semantics = [#tpu.dimension_semantics<parallel>, #tpu.dimension_semantics<arbitrary>], iteration_bounds = array<i64: 1, 1>, scalar_prefetch = 0 : i64, scratch_operands = 0 : i64, tpu.core_type = #tpu.core_type<tc>, window_params = [{transform_indices = @transform_0, window_bounds = array<i64: 32, 8>}, {transform_indices = @transform_1, window_bounds = array<i64: 32, 8>}, {transform_indices = @transform_2, window_bounds = array<i64: 1, 8, 8>}, {transform_indices = @transform_3, window_bounds = array<i64: 1, 8, 8>}, {transform_indices = @transform_4, window_bounds = array<i64: 1, 8, 8>}, {transform_indices = @transform_5, window_bounds = array<i64: 1, 1, 8>}, {transform_indices = @transform_6, window_bounds = array<i64: 1, 1, 8>}]} {
    %c0_i32 = arith.constant 0 : i32
    %0 = arith.cmpi eq, %arg1, %c0_i32 : i32
    %1 = arith.extui %0 : i1 to i32
    %c0_i32_0 = arith.constant 0 : i32
    %2 = arith.cmpi ne, %1, %c0_i32_0 : i32
    scf.if %2 {
      %cst_38 = arith.constant 0.000000e+00 : f32
      %42 = vector.broadcast %cst_38 : f32 to vector<8x8xf32>
      %c0_39 = arith.constant 0 : index
      %c0_40 = arith.constant 0 : index
      %c0_41 = arith.constant 0 : index
      %43 = vector.load %arg4[%c0_39, %c0_40, %c0_41] : memref<1x8x8xf32, #tpu.memory_space<vmem>>, vector<1x8x8xf32>
      %44 = vector.shape_cast %43 : vector<1x8x8xf32> to vector<8x8xf32>
      %45 = vector.shape_cast %42 : vector<8x8xf32> to vector<1x8x8xf32>
      tpu.vector_store %arg4[%c0_39, %c0_40, %c0_41], %45 {strides = array<i32>} : memref<1x8x8xf32, #tpu.memory_space<vmem>>, vector<1x8x8xf32>,
      %cst_42 = arith.constant 0.000000e+00 : f32
      %46 = vector.broadcast %cst_42 : f32 to vector<8x8xf32>
      %c0_43 = arith.constant 0 : index
      %c0_44 = arith.constant 0 : index
      %c0_45 = arith.constant 0 : index
      %47 = vector.load %arg5[%c0_43, %c0_44, %c0_45] : memref<1x8x8xf32, #tpu.memory_space<vmem>>, vector<1x8x8xf32>
      %48 = vector.shape_cast %47 : vector<1x8x8xf32> to vector<8x8xf32>
      %49 = vector.shape_cast %46 : vector<8x8xf32> to vector<1x8x8xf32>
      tpu.vector_store %arg5[%c0_43, %c0_44, %c0_45], %49 {strides = array<i32>} : memref<1x8x8xf32, #tpu.memory_space<vmem>>, vector<1x8x8xf32>,
      %cst_46 = arith.constant 0.000000e+00 : f32
      %50 = vector.broadcast %cst_46 : f32 to vector<8x8xf32>
      %c0_47 = arith.constant 0 : index
      %c0_48 = arith.constant 0 : index
      %c0_49 = arith.constant 0 : index
      %51 = vector.load %arg6[%c0_47, %c0_48, %c0_49] : memref<1x8x8xf32, #tpu.memory_space<vmem>>, vector<1x8x8xf32>
      %52 = vector.shape_cast %51 : vector<1x8x8xf32> to vector<8x8xf32>
      %53 = vector.shape_cast %50 : vector<8x8xf32> to vector<1x8x8xf32>
      tpu.vector_store %arg6[%c0_47, %c0_48, %c0_49], %53 {strides = array<i32>} : memref<1x8x8xf32, #tpu.memory_space<vmem>>, vector<1x8x8xf32>,
      %cst_50 = arith.constant 0.000000e+00 : f32
      %54 = vector.broadcast %cst_50 : f32 to vector<1x8xf32>
      %c0_51 = arith.constant 0 : index
      %c0_52 = arith.constant 0 : index
      %c0_53 = arith.constant 0 : index
      %55 = vector.load %arg7[%c0_51, %c0_52, %c0_53] : memref<1x1x8xf32, #tpu.memory_space<vmem>>, vector<1x1x8xf32>
      %56 = vector.shape_cast %55 : vector<1x1x8xf32> to vector<1x8xf32>
      %57 = vector.shape_cast %54 : vector<1x8xf32> to vector<1x1x8xf32>
      tpu.vector_store %arg7[%c0_51, %c0_52, %c0_53], %57 {strides = array<i32>} : memref<1x1x8xf32, #tpu.memory_space<vmem>>, vector<1x1x8xf32>,
      %cst_54 = arith.constant 0.000000e+00 : f32
      %58 = vector.broadcast %cst_54 : f32 to vector<1x8xf32>
      %c0_55 = arith.constant 0 : index
      %c0_56 = arith.constant 0 : index
      %c0_57 = arith.constant 0 : index
      %59 = vector.load %arg8[%c0_55, %c0_56, %c0_57] : memref<1x1x8xf32, #tpu.memory_space<vmem>>, vector<1x1x8xf32>
      %60 = vector.shape_cast %59 : vector<1x1x8xf32> to vector<1x8xf32>
      %61 = vector.shape_cast %58 : vector<1x8xf32> to vector<1x1x8xf32>
      tpu.vector_store %arg8[%c0_55, %c0_56, %c0_57], %61 {strides = array<i32>} : memref<1x1x8xf32, #tpu.memory_space<vmem>>, vector<1x1x8xf32>,
    } else {
    }
    %c0 = arith.constant 0 : index
    %c0_1 = arith.constant 0 : index
    %3 = vector.load %arg2[%c0, %c0_1] : memref<32x8xf32, #tpu.memory_space<vmem>>, vector<32x8xf32>
    %c0_2 = arith.constant 0 : index
    %c0_3 = arith.constant 0 : index
    %4 = vector.load %arg3[%c0_2, %c0_3] : memref<32x8xf32, #tpu.memory_space<vmem>>, vector<32x8xf32>
    %c0_4 = arith.constant 0 : index
    %c0_5 = arith.constant 0 : index
    %c0_6 = arith.constant 0 : index
    %5 = vector.load %arg4[%c0_4, %c0_5, %c0_6] : memref<1x8x8xf32, #tpu.memory_space<vmem>>, vector<1x8x8xf32>
    %6 = vector.shape_cast %5 : vector<1x8x8xf32> to vector<8x8xf32>
    %cst = arith.constant dense<0.000000e+00> : vector<8x8xf32>
    %7 = tpu.matmul %3, %3, %cst {dimension_numbers = #tpu.dot_dimension_numbers<[0], [0], [1], [1], [0, 1, 1, 1], [], []>} : vector<32x8xf32>, vector<32x8xf32>, vector<8x8xf32> -> vector<8x8xf32>
    %8 = arith.addf %6, %7 : vector<8x8xf32>
    %c0_7 = arith.constant 0 : index
    %c0_8 = arith.constant 0 : index
    %c0_9 = arith.constant 0 : index
    %9 = vector.load %arg4[%c0_7, %c0_8, %c0_9] : memref<1x8x8xf32, #tpu.memory_space<vmem>>, vector<1x8x8xf32>
    %10 = vector.shape_cast %9 : vector<1x8x8xf32> to vector<8x8xf32>
    %11 = vector.shape_cast %8 : vector<8x8xf32> to vector<1x8x8xf32>
    tpu.vector_store %arg4[%c0_7, %c0_8, %c0_9], %11 {strides = array<i32>} : memref<1x8x8xf32, #tpu.memory_space<vmem>>, vector<1x8x8xf32>,
    %c0_10 = arith.constant 0 : index
    %c0_11 = arith.constant 0 : index
    %c0_12 = arith.constant 0 : index
    %12 = vector.load %arg5[%c0_10, %c0_11, %c0_12] : memref<1x8x8xf32, #tpu.memory_space<vmem>>, vector<1x8x8xf32>
    %13 = vector.shape_cast %12 : vector<1x8x8xf32> to vector<8x8xf32>
    %cst_13 = arith.constant dense<0.000000e+00> : vector<8x8xf32>
    %14 = tpu.matmul %4, %4, %cst_13 {dimension_numbers = #tpu.dot_dimension_numbers<[0], [0], [1], [1], [0, 1, 1, 1], [], []>} : vector<32x8xf32>, vector<32x8xf32>, vector<8x8xf32> -> vector<8x8xf32>
    %15 = arith.addf %13, %14 : vector<8x8xf32>
    %c0_14 = arith.constant 0 : index
    %c0_15 = arith.constant 0 : index
    %c0_16 = arith.constant 0 : index
    %16 = vector.load %arg5[%c0_14, %c0_15, %c0_16] : memref<1x8x8xf32, #tpu.memory_space<vmem>>, vector<1x8x8xf32>
    %17 = vector.shape_cast %16 : vector<1x8x8xf32> to vector<8x8xf32>
    %18 = vector.shape_cast %15 : vector<8x8xf32> to vector<1x8x8xf32>
    tpu.vector_store %arg5[%c0_14, %c0_15, %c0_16], %18 {strides = array<i32>} : memref<1x8x8xf32, #tpu.memory_space<vmem>>, vector<1x8x8xf32>,
    %c0_17 = arith.constant 0 : index
    %c0_18 = arith.constant 0 : index
    %c0_19 = arith.constant 0 : index
    %19 = vector.load %arg6[%c0_17, %c0_18, %c0_19] : memref<1x8x8xf32, #tpu.memory_space<vmem>>, vector<1x8x8xf32>
    %20 = vector.shape_cast %19 : vector<1x8x8xf32> to vector<8x8xf32>
    %cst_20 = arith.constant dense<0.000000e+00> : vector<8x8xf32>
    %21 = tpu.matmul %3, %4, %cst_20 {dimension_numbers = #tpu.dot_dimension_numbers<[0], [0], [1], [1], [0, 1, 1, 1], [], []>} : vector<32x8xf32>, vector<32x8xf32>, vector<8x8xf32> -> vector<8x8xf32>
    %22 = arith.addf %20, %21 : vector<8x8xf32>
    %c0_21 = arith.constant 0 : index
    %c0_22 = arith.constant 0 : index
    %c0_23 = arith.constant 0 : index
    %23 = vector.load %arg6[%c0_21, %c0_22, %c0_23] : memref<1x8x8xf32, #tpu.memory_space<vmem>>, vector<1x8x8xf32>
    %24 = vector.shape_cast %23 : vector<1x8x8xf32> to vector<8x8xf32>
    %25 = vector.shape_cast %22 : vector<8x8xf32> to vector<1x8x8xf32>
    tpu.vector_store %arg6[%c0_21, %c0_22, %c0_23], %25 {strides = array<i32>} : memref<1x8x8xf32, #tpu.memory_space<vmem>>, vector<1x8x8xf32>,
    %c0_24 = arith.constant 0 : index
    %c0_25 = arith.constant 0 : index
    %c0_26 = arith.constant 0 : index
    %26 = vector.load %arg7[%c0_24, %c0_25, %c0_26] : memref<1x1x8xf32, #tpu.memory_space<vmem>>, vector<1x1x8xf32>
    %27 = vector.shape_cast %26 : vector<1x1x8xf32> to vector<1x8xf32>
    %cst_27 = arith.constant dense<0.000000e+00> : vector<8xf32>
    %28 = vector.multi_reduction <add>, %3, %cst_27 [0] : vector<32x8xf32> to vector<8xf32>
    %29 = vector.shape_cast %28 : vector<8xf32> to vector<1x8xf32>
    %30 = arith.addf %27, %29 : vector<1x8xf32>
    %c0_28 = arith.constant 0 : index
    %c0_29 = arith.constant 0 : index
    %c0_30 = arith.constant 0 : index
    %31 = vector.load %arg7[%c0_28, %c0_29, %c0_30] : memref<1x1x8xf32, #tpu.memory_space<vmem>>, vector<1x1x8xf32>
    %32 = vector.shape_cast %31 : vector<1x1x8xf32> to vector<1x8xf32>
    %33 = vector.shape_cast %30 : vector<1x8xf32> to vector<1x1x8xf32>
    tpu.vector_store %arg7[%c0_28, %c0_29, %c0_30], %33 {strides = array<i32>} : memref<1x1x8xf32, #tpu.memory_space<vmem>>, vector<1x1x8xf32>,
    %c0_31 = arith.constant 0 : index
    %c0_32 = arith.constant 0 : index
    %c0_33 = arith.constant 0 : index
    %34 = vector.load %arg8[%c0_31, %c0_32, %c0_33] : memref<1x1x8xf32, #tpu.memory_space<vmem>>, vector<1x1x8xf32>
    %35 = vector.shape_cast %34 : vector<1x1x8xf32> to vector<1x8xf32>
    %cst_34 = arith.constant dense<0.000000e+00> : vector<8xf32>
    %36 = vector.multi_reduction <add>, %4, %cst_34 [0] : vector<32x8xf32> to vector<8xf32>
    %37 = vector.shape_cast %36 : vector<8xf32> to vector<1x8xf32>
    %38 = arith.addf %35, %37 : vector<1x8xf32>
    %c0_35 = arith.constant 0 : index
    %c0_36 = arith.constant 0 : index
    %c0_37 = arith.constant 0 : index
    %39 = vector.load %arg8[%c0_35, %c0_36, %c0_37] : memref<1x1x8xf32, #tpu.memory_space<vmem>>, vector<1x1x8xf32>
    %40 = vector.shape_cast %39 : vector<1x1x8xf32> to vector<1x8xf32>
    %41 = vector.shape_cast %38 : vector<1x8xf32> to vector<1x1x8xf32>
    tpu.vector_store %arg8[%c0_35, %c0_36, %c0_37], %41 {strides = array<i32>} : memref<1x1x8xf32, #tpu.memory_space<vmem>>, vector<1x1x8xf32>,
    return
  }
  func.func @transform_0(%arg0: i32, %arg1: i32) -> (i32, i32) {
    %c1_i32 = arith.constant 1 : i32
    %0 = arith.muli %arg0, %c1_i32 : i32
    %1 = arith.addi %0, %arg1 : i32
    %c0_i32 = arith.constant 0 : i32
    %c0_i32_0 = arith.constant 0 : i32
    return %1, %c0_i32 : i32, i32
  }
  func.func @transform_1(%arg0: i32, %arg1: i32) -> (i32, i32) {
    %c1_i32 = arith.constant 1 : i32
    %0 = arith.muli %arg0, %c1_i32 : i32
    %1 = arith.addi %0, %arg1 : i32
    %c0_i32 = arith.constant 0 : i32
    %c0_i32_0 = arith.constant 0 : i32
    return %1, %c0_i32 : i32, i32
  }
  func.func @transform_2(%arg0: i32, %arg1: i32) -> (i32, i32, i32) {
    %c0_i32 = arith.constant 0 : i32
    %c0_i32_0 = arith.constant 0 : i32
    %c0_i32_1 = arith.constant 0 : i32
    return %arg0, %c0_i32, %c0_i32_0 : i32, i32, i32
  }
  func.func @transform_3(%arg0: i32, %arg1: i32) -> (i32, i32, i32) {
    %c0_i32 = arith.constant 0 : i32
    %c0_i32_0 = arith.constant 0 : i32
    %c0_i32_1 = arith.constant 0 : i32
    return %arg0, %c0_i32, %c0_i32_0 : i32, i32, i32
  }
  func.func @transform_4(%arg0: i32, %arg1: i32) -> (i32, i32, i32) {
    %c0_i32 = arith.constant 0 : i32
    %c0_i32_0 = arith.constant 0 : i32
    %c0_i32_1 = arith.constant 0 : i32
    return %arg0, %c0_i32, %c0_i32_0 : i32, i32, i32
  }
  func.func @transform_5(%arg0: i32, %arg1: i32) -> (i32, i32, i32) {
    %c0_i32 = arith.constant 0 : i32
    %c0_i32_0 = arith.constant 0 : i32
    %c0_i32_1 = arith.constant 0 : i32
    return %arg0, %c0_i32, %c0_i32_0 : i32, i32, i32
  }
  func.func @transform_6(%arg0: i32, %arg1: i32) -> (i32, i32, i32) {
    %c0_i32 = arith.constant 0 : i32
    %c0_i32_0 = arith.constant 0 : i32
    %c0_i32_1 = arith.constant 0 : i32
    return %arg0, %c0_i32, %c0_i32_0 : i32, i32, i32
  }
}

</mosaic_0001>

<llo_original>
// kernel: tpu_custom_call.1
$region0: #{tpu_custom_call.1}
  #allocation0 [shape = 'u32[]', space=smem, size = 0x4, offset = 0x4, fixed_abs, tag = 'smem constant byte address 0x4 - core index']
  #allocation1 [shape = 'u32[144,128]{1,0:T(1,128)}', space=vmem, size = 0x12000, scoped, tag = 'internal scratch']
  %s0 = inlined_call_operand.vmem [shape: f32[32,8], index: 0, kind: input, shape index: {}]
  %s1 = inlined_call_operand.vmem [shape: f32[32,8], index: 1, kind: input, shape index: {}]
  %s2 = inlined_call_operand.hbm [shape: f32[1,8,8], index: 2, kind: output, shape index: {0}]
  %s3 = inlined_call_operand.hbm [shape: f32[1,8,8], index: 3, kind: output, shape index: {1}]
  %s4 = inlined_call_operand.hbm [shape: f32[1,8,8], index: 4, kind: output, shape index: {2}]
  %s5 = inlined_call_operand.hbm [shape: f32[1,1,8], index: 5, kind: output, shape index: {3}]
  %s6 = inlined_call_operand.hbm [shape: f32[1,1,8], index: 6, kind: output, shape index: {4}]
  %7 = xla_tuple %s2, %s3, %s4, %s5, %s6
  %s8 = sld [smem:[#allocation0]]
  $region54: #{tpu_custom_call.1} parent=0
    _
  %s10 = ssub.s32 1, %s8
  %s11 = scalar_select 0, %s10, %s8
  $region1: #{tpu_custom_call.1} parent=0
    #allocation2 [shape = 'u8[4096]{0}', space=vmem, size = 0x1000, scoped, tag = 'output window, operand 0, single buffered']
    #allocation3 [shape = 's32[1]{0}', space=sflag, size = 0x4, scoped, tag = 'scoped memory for tpu_custom_call.1']
    #allocation4 [shape = 'u8[4096]{0}', space=vmem, size = 0x1000, scoped, tag = 'output window, operand 1, single buffered']
    #allocation5 [shape = 's32[1]{0}', space=sflag, size = 0x4, scoped, tag = 'scoped memory for tpu_custom_call.1']
    #allocation6 [shape = 'u8[4096]{0}', space=vmem, size = 0x1000, scoped, tag = 'output window, operand 2, single buffered']
    #allocation7 [shape = 'u8[512]{0}', space=vmem, size = 0x400, scoped, tag = 'output window, operand 3, single buffered']
    #allocation8 [shape = 's32[1]{0}', space=sflag, size = 0x4, scoped, tag = 'scoped memory for tpu_custom_call.1']
    #allocation9 [shape = 'u8[512]{0}', space=vmem, size = 0x400, scoped, tag = 'output window, operand 4, single buffered']
    %12 = vsyncpa [#allocation3], 0
    %13 = vsyncpa [#allocation5], 0
    %14 = vsyncpa [#allocation8], 0
    // Predicated region
    $region2: #{tpu_custom_call.1} parent=1 // pred_check
      _
    $region3: #{tpu_custom_call.1} parent=1 // pred_check_branch
      %16 = sbr.rel (0) target = $region5
    $region4: #{tpu_custom_call.1} parent=1 // pred_region
      %s17 = sadd.s32 0, 0
      %s18 = smul.u32 4, %s17
      %p19 = scmp.lt.s32.totalorder %s18, 3
      %s20 = scalar_select %p19, %s18, 3
      %s21 = smul.addr %s20, 8
      %s22 = scalar_lea.vmem %s0, %s21
      %s23 = sadd.s32 0, 0
      %s24 = smul.u32 4, %s23
    $region5: #{tpu_custom_call.1} parent=1 // pred_fallthru
      _
    // Predicated region
    $region6: #{tpu_custom_call.1} parent=1 // pred_check
      _
    $region7: #{tpu_custom_call.1} parent=1 // pred_check_branch
      %26 = sbr.rel (0) target = $region9
    $region8: #{tpu_custom_call.1} parent=1 // pred_region
      %s27 = sadd.s32 0, 0
      %s28 = smul.u32 4, %s27
      %p29 = scmp.lt.s32.totalorder %s28, 3
      %s30 = scalar_select %p29, %s28, 3
      %s31 = smul.addr %s30, 8
      %s32 = scalar_lea.vmem %s1, %s31
      %s33 = sadd.s32 0, 0
      %s34 = smul.u32 4, %s33
    $region9: #{tpu_custom_call.1} parent=1 // pred_fallthru
      _
    %s35 = sadd.s32 0, 0
    %s36 = smul.u32 4, %s35
    %p37 = scmp.lt.s32.totalorder %s36, 3
    %s38 = scalar_select %p37, %s36, 3
    %s39 = smul.addr %s38, 8
    %s40 = scalar_lea.vmem %s0, %s39
    %s41 = sadd.s32 0, 0
    %s42 = smul.u32 4, %s41
    %p43 = scmp.lt.s32.totalorder %s42, 3
    %s44 = scalar_select %p43, %s42, 3
    %s45 = smul.addr %s44, 8
    %s46 = scalar_lea.vmem %s1, %s45
    %s47 = sadd.s32 0, 0
    %s48 = smul.u32 4, %s47
    %p49 = scmp.lt.s32.totalorder %s48, 3
    %s50 = scalar_select %p49, %s48, 3
    %s51 = smul.addr %s50, 8
    %s52 = scalar_lea.vmem %s0, %s51
    %s53 = sadd.s32 0, 0
    %s54 = smul.u32 4, %s53
    %s55 = sadd.s32 0, 0
    %s56 = smul.u32 4, %s55
    %p57 = scmp.lt.s32.totalorder %s56, 3
    %s58 = scalar_select %p57, %s56, 3
    %s59 = smul.addr %s58, 8
    %s60 = scalar_lea.vmem %s1, %s59
    %s61 = sadd.s32 0, 0
    %s62 = smul.u32 4, %s61
    %p63 = scmp.eq.s32.totalorder 0, 0
    // Predicated region
    $region10: #{tpu_custom_call.1} parent=1 // pred_check
      %p64 = pneg %p63
    $region11: #{tpu_custom_call.1} parent=1 // pred_check_branch
      %66 = sbr.rel (%p64) target = $region13
    $region12: #{tpu_custom_call.1} parent=1 // pred_region
      %vm67 = vcmask 64512
      %68 = vst.msk [vmem:[#allocation2] sm:$0xff] %vm67, 0.0
      %69 = vst.msk [vmem:[#allocation4] sm:$0xff] %vm67, 0.0
      %70 = vst.msk [vmem:[#allocation6] sm:$0xff] %vm67, 0.0
      %vm71 = vcmask 57344
      %72 = vst.msk [vmem:[#allocation7] sm:$0x1] %vm71, 0.0
      %73 = vst.msk [vmem:[#allocation9] sm:$0x1] %vm71, 0.0
    $region13: #{tpu_custom_call.1} parent=1 // pred_fallthru
      _
    %v74 = vld [vmem:[%s52] sm:$0xff]
    %v75 = vld [vmem:[%s52 + $0x8] sm:$0xff]
    %v76 = vld [vmem:[%s52 + $0x10] sm:$0xff]
    %v77 = vld [vmem:[%s52 + $0x18] sm:$0xff]
    %v78 = vld [vmem:[%s60] sm:$0xff]
    %v79 = vld [vmem:[%s60 + $0x8] sm:$0xff]
    %v80 = vld [vmem:[%s60 + $0x10] sm:$0xff]
    %v81 = vld [vmem:[%s60 + $0x18] sm:$0xff]
    %v82 = vld [vmem:[#allocation2] sm:$0xff]
    %83 = vxpose.xlu0.b32.start [1/16] %v74, 128
    %84 = vxpose.xlu0.b32.cont [2/16] %v75, 128
    %85 = vxpose.xlu0.b32.cont [3/16] %v76, 128
    %86 = vxpose.xlu0.b32.cont [4/16] %v77, 128
    %87 = vxpose.xlu0.b32.cont [5/16] 0.0, 128
    %88 = vxpose.xlu0.b32.cont [6/16] 0.0, 128
    %89 = vxpose.xlu0.b32.cont [7/16] 0.0, 128
    %90 = vxpose.xlu0.b32.cont [8/16] 0.0, 128
    %91 = vxpose.xlu0.b32.cont [9/16] 0.0, 128
    %92 = vxpose.xlu0.b32.cont [10/16] 0.0, 128
    %93 = vxpose.xlu0.b32.cont [11/16] 0.0, 128
    %94 = vxpose.xlu0.b32.cont [12/16] 0.0, 128
    %95 = vxpose.xlu0.b32.cont [13/16] 0.0, 128
    %96 = vxpose.xlu0.b32.cont [14/16] 0.0, 128
    %97 = vxpose.xlu0.b32.cont [15/16] 0.0, 128
    %98 = vxpose.xlu0.b32.end [16/16] 0.0, 128
    %v99 = vpop.trf.xlu0
    %v100 = vpop.trf.xlu0
    %v101 = vpop.trf.xlu0
    %v102 = vpop.trf.xlu0
    %v103 = vpop.trf.xlu0
    %v104 = vpop.trf.xlu0
    %v105 = vpop.trf.xlu0
    %v106 = vpop.trf.xlu0
    %v107 = vpop.trf.xlu0
    %v108 = vpop.trf.xlu0
    %v109 = vpop.trf.xlu0
    %v110 = vpop.trf.xlu0
    %v111 = vpop.trf.xlu0
    %v112 = vpop.trf.xlu0
    %v113 = vpop.trf.xlu0
    %v114 = vpop.trf.xlu0
    %vm115 = vcmask 261120
    %v117 = vsel %vm115, %v99, 0
    %119 = vmatprep.subr.mxu0 0.0
    %120 = vmatpush1.msra.mxu0 0.0
    %121 = vmatprep.subr.mxu0 0.0
    %122 = vmatpush1.msra.mxu0 0.0
    %123 = vmatprep.subr.mxu0 0.0
    %124 = vmatpush1.msra.mxu0 0.0
    %125 = vmatprep.subr.mxu0 0.0
    %126 = vmatpush1.msra.mxu0 0.0
    %127 = vmatprep.subr.mxu0 0.0
    %128 = vmatpush1.msra.mxu0 0.0
    %129 = vmatprep.subr.mxu0 0.0
    %130 = vmatpush1.msra.mxu0 0.0
    %131 = vmatprep.subr.mxu0 0.0
    %132 = vmatpush1.msra.mxu0 0.0
    %133 = vmatprep.subr.mxu0 0.0
    %134 = vmatpush1.msra.mxu0 0.0
    %135 = vmatprep.subr.mxu0 0.0
    %136 = vmatpush1.msra.mxu0 0.0
    %137 = vmatprep.subr.mxu0 0.0
    %138 = vmatpush1.msra.mxu0 0.0
    %139 = vmatprep.subr.mxu0 0.0
    %140 = vmatpush1.msra.mxu0 0.0
    %141 = vmatprep.subr.mxu0 0.0
    %142 = vmatpush1.msra.mxu0 0.0
    %143 = vmatprep.subr.mxu0 0.0
    %144 = vmatpush1.msra.mxu0 %v77
    %145 = vmatprep.subr.mxu0 0.0
    %146 = vmatpush1.msra.mxu0 %v76
    %147 = vmatprep.subr.mxu0 0.0
    %148 = vmatpush1.msra.mxu0 %v75
    %149 = vmatprep.subr.mxu0 0.0
    %150 = vmatpush1.msra.mxu0 %v74
    %151 = vmatprep.subr.mxu0 0.0
    %152 = vmatpush2.msra.mxu0 0.0
    %153 = vmatprep.subr.mxu0 0.0
    %154 = vmatpush2.msra.mxu0 0.0
    %155 = vmatprep.subr.mxu0 0.0
    %156 = vmatpush2.msra.mxu0 0.0
    %157 = vmatprep.subr.mxu0 0.0
    %158 = vmatpush2.msra.mxu0 0.0
    %159 = vmatprep.subr.mxu0 0.0
    %160 = vmatpush2.msra.mxu0 0.0
    %161 = vmatprep.subr.mxu0 0.0
    %162 = vmatpush2.msra.mxu0 0.0
    %163 = vmatprep.subr.mxu0 0.0
    %164 = vmatpush2.msra.mxu0 0.0
    %165 = vmatprep.subr.mxu0 0.0
    %166 = vmatpush2.msra.mxu0 0.0
    %167 = vmatprep.subr.mxu0 0.0
    %168 = vmatpush2.msra.mxu0 0.0
    %169 = vmatprep.subr.mxu0 0.0
    %170 = vmatpush2.msra.mxu0 0.0
    %171 = vmatprep.subr.mxu0 0.0
    %172 = vmatpush2.msra.mxu0 0.0
    %173 = vmatprep.subr.mxu0 0.0
    %174 = vmatpush2.msra.mxu0 0.0
    %175 = vmatprep.subr.mxu0 0.0
    %176 = vmatpush2.msra.mxu0 0.0
    %177 = vmatprep.subr.mxu0 0.0
    %178 = vmatpush2.msra.mxu0 0.0
    %179 = vmatprep.subr.mxu0 0.0
    %180 = vmatpush2.msra.mxu0 0.0
    %181 = vmatprep.subr.mxu0 0.0
    %182 = vmatpush2.msra.mxu0 0.0
    %183 = vmatprep.mubr.f32.mxu0 0.0
    %184 = vmatmul.mubr.f32.gmra.mxu0 %v117
    %v185 = vpop.f32.mrf.mxu0
    %v186 = vadd.f32 0.0, %v185
    %v187 = vpop.f32.mrf.mxu0
    %188 = vdwg.mxu0
    %v189 = vadd.f32 %v82, %v186
    %vm190 = vcmask 64512
    %191 = vst.msk [vmem:[#allocation2] sm:$0xff] %vm190, %v189
    %v192 = vld [vmem:[#allocation4] sm:$0xff]
    %193 = vxpose.xlu0.b32.start [1/16] %v78, 128
    %194 = vxpose.xlu0.b32.cont [2/16] %v79, 128
    %195 = vxpose.xlu0.b32.cont [3/16] %v80, 128
    %196 = vxpose.xlu0.b32.cont [4/16] %v81, 128
    %197 = vxpose.xlu0.b32.cont [5/16] 0.0, 128
    %198 = vxpose.xlu0.b32.cont [6/16] 0.0, 128
    %199 = vxpose.xlu0.b32.cont [7/16] 0.0, 128
    %200 = vxpose.xlu0.b32.cont [8/16] 0.0, 128
    %201 = vxpose.xlu0.b32.cont [9/16] 0.0, 128
    %202 = vxpose.xlu0.b32.cont [10/16] 0.0, 128
    %203 = vxpose.xlu0.b32.cont [11/16] 0.0, 128
    %204 = vxpose.xlu0.b32.cont [12/16] 0.0, 128
    %205 = vxpose.xlu0.b32.cont [13/16] 0.0, 128
    %206 = vxpose.xlu0.b32.cont [14/16] 0.0, 128
    %207 = vxpose.xlu0.b32.cont [15/16] 0.0, 128
    %208 = vxpose.xlu0.b32.end [16/16] 0.0, 128
    %v209 = vpop.trf.xlu0
    %v210 = vpop.trf.xlu0
    %v211 = vpop.trf.xlu0
    %v212 = vpop.trf.xlu0
    %v213 = vpop.trf.xlu0
    %v214 = vpop.trf.xlu0
    %v215 = vpop.trf.xlu0
    %v216 = vpop.trf.xlu0
    %v217 = vpop.trf.xlu0
    %v218 = vpop.trf.xlu0
    %v219 = vpop.trf.xlu0
    %v220 = vpop.trf.xlu0
    %v221 = vpop.trf.xlu0
    %v222 = vpop.trf.xlu0
    %v223 = vpop.trf.xlu0
    %v224 = vpop.trf.xlu0
    %v226 = vsel %vm115, %v209, 0
    %228 = vmatprep.subr.mxu0 0.0
    %229 = vmatpush1.msra.mxu0 0.0
    %230 = vmatprep.subr.mxu0 0.0
    %231 = vmatpush1.msra.mxu0 0.0
    %232 = vmatprep.subr.mxu0 0.0
    %233 = vmatpush1.msra.mxu0 0.0
    %234 = vmatprep.subr.mxu0 0.0
    %235 = vmatpush1.msra.mxu0 0.0
    %236 = vmatprep.subr.mxu0 0.0
    %237 = vmatpush1.msra.mxu0 0.0
    %238 = vmatprep.subr.mxu0 0.0
    %239 = vmatpush1.msra.mxu0 0.0
    %240 = vmatprep.subr.mxu0 0.0
    %241 = vmatpush1.msra.mxu0 0.0
    %242 = vmatprep.subr.mxu0 0.0
    %243 = vmatpush1.msra.mxu0 0.0
    %244 = vmatprep.subr.mxu0 0.0
    %245 = vmatpush1.msra.mxu0 0.0
    %246 = vmatprep.subr.mxu0 0.0
    %247 = vmatpush1.msra.mxu0 0.0
    %248 = vmatprep.subr.mxu0 0.0
    %249 = vmatpush1.msra.mxu0 0.0
    %250 = vmatprep.subr.mxu0 0.0
    %251 = vmatpush1.msra.mxu0 0.0
    %252 = vmatprep.subr.mxu0 0.0
    %253 = vmatpush1.msra.mxu0 %v81
    %254 = vmatprep.subr.mxu0 0.0
    %255 = vmatpush1.msra.mxu0 %v80
    %256 = vmatprep.subr.mxu0 0.0
    %257 = vmatpush1.msra.mxu0 %v79
    %258 = vmatprep.subr.mxu0 0.0
    %259 = vmatpush1.msra.mxu0 %v78
    %260 = vmatprep.subr.mxu0 0.0
    %261 = vmatpush2.msra.mxu0 0.0
    %262 = vmatprep.subr.mxu0 0.0
    %263 = vmatpush2.msra.mxu0 0.0
    %264 = vmatprep.subr.mxu0 0.0
    %265 = vmatpush2.msra.mxu0 0.0
    %266 = vmatprep.subr.mxu0 0.0
    %267 = vmatpush2.msra.mxu0 0.0
    %268 = vmatprep.subr.mxu0 0.0
    %269 = vmatpush2.msra.mxu0 0.0
    %270 = vmatprep.subr.mxu0 0.0
    %271 = vmatpush2.msra.mxu0 0.0
    %272 = vmatprep.subr.mxu0 0.0
    %273 = vmatpush2.msra.mxu0 0.0
    %274 = vmatprep.subr.mxu0 0.0
    %275 = vmatpush2.msra.mxu0 0.0
    %276 = vmatprep.subr.mxu0 0.0
    %277 = vmatpush2.msra.mxu0 0.0
    %278 = vmatprep.subr.mxu0 0.0
    %279 = vmatpush2.msra.mxu0 0.0
    %280 = vmatprep.subr.mxu0 0.0
    %281 = vmatpush2.msra.mxu0 0.0
    %282 = vmatprep.subr.mxu0 0.0
    %283 = vmatpush2.msra.mxu0 0.0
    %284 = vmatprep.subr.mxu0 0.0
    %285 = vmatpush2.msra.mxu0 0.0
    %286 = vmatprep.subr.mxu0 0.0
    %287 = vmatpush2.msra.mxu0 0.0
    %288 = vmatprep.subr.mxu0 0.0
    %289 = vmatpush2.msra.mxu0 0.0
    %290 = vmatprep.subr.mxu0 0.0
    %291 = vmatpush2.msra.mxu0 0.0
    %292 = vmatprep.mubr.f32.mxu0 0.0
    %293 = vmatmul.mubr.f32.gmra.mxu0 %v226
    %v294 = vpop.f32.mrf.mxu0
    %v295 = vadd.f32 0.0, %v294
    %v296 = vpop.f32.mrf.mxu0
    %297 = vdwg.mxu0
    %v298 = vadd.f32 %v192, %v295
    %299 = vst.msk [vmem:[#allocation4] sm:$0xff] %vm190, %v298
    %v300 = vld [vmem:[#allocation6] sm:$0xff]
    %301 = vmatprep.subr.mxu0 0.0
    %302 = vmatpush1.msra.mxu0 0.0
    %303 = vmatprep.subr.mxu0 0.0
    %304 = vmatpush1.msra.mxu0 0.0
    %305 = vmatprep.subr.mxu0 0.0
    %306 = vmatpush1.msra.mxu0 0.0
    %307 = vmatprep.subr.mxu0 0.0
    %308 = vmatpush1.msra.mxu0 0.0
    %309 = vmatprep.subr.mxu0 0.0
    %310 = vmatpush1.msra.mxu0 0.0
    %311 = vmatprep.subr.mxu0 0.0
    %312 = vmatpush1.msra.mxu0 0.0
    %313 = vmatprep.subr.mxu0 0.0
    %314 = vmatpush1.msra.mxu0 0.0
    %315 = vmatprep.subr.mxu0 0.0
    %316 = vmatpush1.msra.mxu0 0.0
    %317 = vmatprep.subr.mxu0 0.0
    %318 = vmatpush1.msra.mxu0 0.0
    %319 = vmatprep.subr.mxu0 0.0
    %320 = vmatpush1.msra.mxu0 0.0
    %321 = vmatprep.subr.mxu0 0.0
    %322 = vmatpush1.msra.mxu0 0.0
    %323 = vmatprep.subr.mxu0 0.0
    %324 = vmatpush1.msra.mxu0 0.0
    %325 = vmatprep.subr.mxu0 0.0
    %326 = vmatpush1.msra.mxu0 %v81
    %327 = vmatprep.subr.mxu0 0.0
    %328 = vmatpush1.msra.mxu0 %v80
    %329 = vmatprep.subr.mxu0 0.0
    %330 = vmatpush1.msra.mxu0 %v79
    %331 = vmatprep.subr.mxu0 0.0
    %332 = vmatpush1.msra.mxu0 %v78
    %333 = vmatprep.subr.mxu0 0.0
    %334 = vmatpush2.msra.mxu0 0.0
    %335 = vmatprep.subr.mxu0 0.0
    %336 = vmatpush2.msra.mxu0 0.0
    %337 = vmatprep.subr.mxu0 0.0
    %338 = vmatpush2.msra.mxu0 0.0
    %339 = vmatprep.subr.mxu0 0.0
    %340 = vmatpush2.msra.mxu0 0.0
    %341 = vmatprep.subr.mxu0 0.0
    %342 = vmatpush2.msra.mxu0 0.0
    %343 = vmatprep.subr.mxu0 0.0
    %344 = vmatpush2.msra.mxu0 0.0
    %345 = vmatprep.subr.mxu0 0.0
    %346 = vmatpush2.msra.mxu0 0.0
    %347 = vmatprep.subr.mxu0 0.0
    %348 = vmatpush2.msra.mxu0 0.0
    %349 = vmatprep.subr.mxu0 0.0
    %350 = vmatpush2.msra.mxu0 0.0
    %351 = vmatprep.subr.mxu0 0.0
    %352 = vmatpush2.msra.mxu0 0.0
    %353 = vmatprep.subr.mxu0 0.0
    %354 = vmatpush2.msra.mxu0 0.0
    %355 = vmatprep.subr.mxu0 0.0
    %356 = vmatpush2.msra.mxu0 0.0
    %357 = vmatprep.subr.mxu0 0.0
    %358 = vmatpush2.msra.mxu0 0.0
    %359 = vmatprep.subr.mxu0 0.0
    %360 = vmatpush2.msra.mxu0 0.0
    %361 = vmatprep.subr.mxu0 0.0
    %362 = vmatpush2.msra.mxu0 0.0
    %363 = vmatprep.subr.mxu0 0.0
    %364 = vmatpush2.msra.mxu0 0.0
    %365 = vmatprep.mubr.f32.mxu0 0.0
    %366 = vmatmul.mubr.f32.gmra.mxu0 %v117
    %v367 = vpop.f32.mrf.mxu0
    %v368 = vadd.f32 0.0, %v367
    %v369 = vpop.f32.mrf.mxu0
    %370 = vdwg.mxu0
    %v371 = vadd.f32 %v300, %v368
    %372 = vst.msk [vmem:[#allocation6] sm:$0xff] %vm190, %v371
    %v373 = vld [vmem:[#allocation7] sm:$0x1]
    %v374 = vsel %vm190, %v74, 0.0
    %v375 = vsel %vm190, %v75, 0.0
    %v376 = vadd.f32 %v374, %v375
    %v377 = vsel %vm190, %v76, 0.0
    %v378 = vadd.f32 %v376, %v377
    %v379 = vsel %vm190, %v77, 0.0
    %v380 = vadd.f32 %v378, %v379
    %v381 = vrot.slane %v380, 4
    %v382 = vadd.f32 %v380, %v381
    %v383 = vrot.slane %v382, 2
    %v384 = vadd.f32 %v382, %v383
    %v385 = vrot.slane %v384, 1
    %v386 = vadd.f32 %v384, %v385
    %v387 = vadd.f32 %v373, %v386
    %vm388 = vcmask 57344
    %389 = vst.msk [vmem:[#allocation7] sm:$0x1] %vm388, %v387
    %v390 = vld [vmem:[#allocation9] sm:$0x1]
    %v391 = vsel %vm190, %v78, 0.0
    %v392 = vsel %vm190, %v79, 0.0
    %v393 = vadd.f32 %v391, %v392
    %v394 = vsel %vm190, %v80, 0.0
    %v395 = vadd.f32 %v393, %v394
    %v396 = vsel %vm190, %v81, 0.0
    %v397 = vadd.f32 %v395, %v396
    %v398 = vrot.slane %v397, 4
    %v399 = vadd.f32 %v397, %v398
    %v400 = vrot.slane %v399, 2
    %v401 = vadd.f32 %v399, %v400
    %v402 = vrot.slane %v401, 1
    %v403 = vadd.f32 %v401, %v402
    %v404 = vadd.f32 %v390, %v403
    %405 = vst.msk [vmem:[#allocation9] sm:$0x1] %vm388, %v404
    // Predicated region
    $region14: #{tpu_custom_call.1} parent=1 // pred_check
      _
    $region15: #{tpu_custom_call.1} parent=1 // pred_check_branch
      %407 = sbr.rel (0) target = $region17
    $region16: #{tpu_custom_call.1} parent=1 // pred_region
      %s409 = ssub.s32 128, 128
      %410 = vsyncadd [#allocation3], %s409
      %s412 = sshll.u32 [#allocation2], 4
      %s413 = int_to_ptr.vmem [resolvable:$true] %s412
      %415 = dma.vmem_to_hbm [thread:$0]  %s413, 128, %s2, [#allocation3]
    $region17: #{tpu_custom_call.1} parent=1 // pred_fallthru
      _
    // Predicated region
    $region18: #{tpu_custom_call.1} parent=1 // pred_check
      _
    $region19: #{tpu_custom_call.1} parent=1 // pred_check_branch
      %417 = sbr.rel (0) target = $region21
    $region20: #{tpu_custom_call.1} parent=1 // pred_region
      %s419 = ssub.s32 128, 128
      %420 = vsyncadd [#allocation5], %s419
      %s422 = sshll.u32 [#allocation4], 4
      %s423 = int_to_ptr.vmem [resolvable:$true] %s422
      %425 = dma.vmem_to_hbm [thread:$0]  %s423, 128, %s3, [#allocation5]
    $region21: #{tpu_custom_call.1} parent=1 // pred_fallthru
      _
    // Predicated region
    $region22: #{tpu_custom_call.1} parent=1 // pred_check
      _
    $region23: #{tpu_custom_call.1} parent=1 // pred_check_branch
      %427 = sbr.rel (0) target = $region25
    $region24: #{tpu_custom_call.1} parent=1 // pred_region
      %s429 = ssub.s32 128, 128
      %430 = vsyncadd [#allocation5], %s429
      %s432 = sshll.u32 [#allocation6], 4
      %s433 = int_to_ptr.vmem [resolvable:$true] %s432
      %435 = dma.vmem_to_hbm [thread:$0]  %s433, 128, %s4, [#allocation5]
    $region25: #{tpu_custom_call.1} parent=1 // pred_fallthru
      _
    // Predicated region
    $region26: #{tpu_custom_call.1} parent=1 // pred_check
      _
    $region27: #{tpu_custom_call.1} parent=1 // pred_check_branch
      %437 = sbr.rel (0) target = $region29
    $region28: #{tpu_custom_call.1} parent=1 // pred_region
      %s439 = ssub.s32 16, 16
      %440 = vsyncadd [#allocation8], %s439
      %s442 = sshll.u32 [#allocation7], 4
      %s443 = int_to_ptr.vmem [resolvable:$true] %s442
      %445 = dma.vmem_to_hbm [thread:$0]  %s443, 16, %s5, [#allocation8]
    $region29: #{tpu_custom_call.1} parent=1 // pred_fallthru
      _
    // Predicated region
    $region30: #{tpu_custom_call.1} parent=1 // pred_check
      _
    $region31: #{tpu_custom_call.1} parent=1 // pred_check_branch
      %447 = sbr.rel (0) target = $region33
    $region32: #{tpu_custom_call.1} parent=1 // pred_region
      %s449 = ssub.s32 16, 16
      %450 = vsyncadd [#allocation8], %s449
      %s452 = sshll.u32 [#allocation9], 4
      %s453 = int_to_ptr.vmem [resolvable:$true] %s452
      %455 = dma.vmem_to_hbm [thread:$0]  %s453, 16, %s6, [#allocation8]
    $region33: #{tpu_custom_call.1} parent=1 // pred_fallthru
      _
    // Predicated region
    $region34: #{tpu_custom_call.1} parent=1 // pred_check
      _
    $region35: #{tpu_custom_call.1} parent=1 // pred_check_branch
      %457 = sbr.rel (0) target = $region37
    $region36: #{tpu_custom_call.1} parent=1 // pred_region
      %458 = dma.done [#allocation3], 128
    $region37: #{tpu_custom_call.1} parent=1 // pred_fallthru
      _
    // Predicated region
    $region38: #{tpu_custom_call.1} parent=1 // pred_check
      _
    $region39: #{tpu_custom_call.1} parent=1 // pred_check_branch
      %460 = sbr.rel (0) target = $region41
    $region40: #{tpu_custom_call.1} parent=1 // pred_region
      %461 = dma.done [#allocation5], 128
    $region41: #{tpu_custom_call.1} parent=1 // pred_fallthru
      _
    // Predicated region
    $region42: #{tpu_custom_call.1} parent=1 // pred_check
      _
    $region43: #{tpu_custom_call.1} parent=1 // pred_check_branch
      %463 = sbr.rel (0) target = $region45
    $region44: #{tpu_custom_call.1} parent=1 // pred_region
      %464 = dma.done [#allocation5], 128
    $region45: #{tpu_custom_call.1} parent=1 // pred_fallthru
      _
    // Predicated region
    $region46: #{tpu_custom_call.1} parent=1 // pred_check
      _
    $region47: #{tpu_custom_call.1} parent=1 // pred_check_branch
      %466 = sbr.rel (0) target = $region49
    $region48: #{tpu_custom_call.1} parent=1 // pred_region
      %467 = dma.done [#allocation8], 16
    $region49: #{tpu_custom_call.1} parent=1 // pred_fallthru
      _
    // Predicated region
    $region50: #{tpu_custom_call.1} parent=1 // pred_check
      _
    $region51: #{tpu_custom_call.1} parent=1 // pred_check_branch
      %469 = sbr.rel (0) target = $region53
    $region52: #{tpu_custom_call.1} parent=1 // pred_region
      %470 = dma.done [#allocation8], 16
    $region53: #{tpu_custom_call.1} parent=1 // pred_fallthru
      _
    %471 = vsyncpa [#allocation3], 1
    %472 = vsyncpa [#allocation5], 1
    %473 = vsyncpa [#allocation8], 1

</llo_original>
